<compile_context>
chip_gen: v7x
topology: tpu7x:2x2x1
jax: 0.10.0
libtpu: 0.0.40
codegen_flags: <defaults>
</compile_context>

<pallas_src>
import functools

import jax
import jax.numpy as jnp
from jax import lax
from jax.experimental import pallas as pl
from jax.experimental.pallas import tpu as pltpu

BN_EPS = 1e-5


def _vmem_capacity_bytes():
    """Physical per-core VMEM bytes; conservative fallback if the query fails."""
    try:
        cap = int(pltpu.get_tpu_info().vmem_capacity_bytes)
        if cap > 0:
            return cap
    except Exception:
        pass
    return 64 << 20  # v7x-sized (smallest current generation) -> conservative


# ---------------------------------------------------------------------------
# Fused single-pass kernel: whole x resident in VMEM (read once, write once).
# ---------------------------------------------------------------------------
def _fused_kernel(x_ref, gw_ref, bw_ref, o_ref, *, inv_count):
    n_b, c, _ = x_ref.shape

    def stat_body(i, carry):
        ssum, qsum = carry
        xi = x_ref[i].astype(jnp.float32)                        # (C, HW)
        ssum = ssum + jnp.sum(xi, axis=1, keepdims=True)         # (C, 1)
        qsum = qsum + jnp.sum(xi * xi, axis=1, keepdims=True)    # (C, 1)
        return ssum, qsum

    zeros = jnp.zeros((c, 1), jnp.float32)
    ssum, qsum = lax.fori_loop(0, n_b, stat_body, (zeros, zeros))

    # TODO(synk): for activations with very large offsets a shifted/Welford
    # accumulation would be more robust than E[x^2]-mean^2.
    mean = ssum * inv_count
    var = jnp.maximum(qsum * inv_count - mean * mean, 0.0)
    inv_std = lax.rsqrt(var + BN_EPS)
    scale = inv_std * gw_ref[...]                                # (C, 1)
    shift = bw_ref[...] - mean * scale                           # (C, 1)

    def apply_body(i, carry):
        xi = x_ref[i].astype(jnp.float32)                        # (C, HW)
        o_ref[i] = (jax.nn.sigmoid(xi * scale + shift) * xi).astype(o_ref.dtype)
        return carry

    lax.fori_loop(0, n_b, apply_body, 0)


# ---------------------------------------------------------------------------
# Two-pass path, pass 1: per-channel raw sums / sums-of-squares.
# Outputs are the accumulators (resident across the "arbitrary" N/HW axes).
# ---------------------------------------------------------------------------
def _stats_kernel(x_ref, sum_ref, sq_ref, *, hw, hw_tile, acc_w, need_mask):
    n = pl.program_id(1)
    t = pl.program_id(2)

    @pl.when((n == 0) & (t == 0))
    def _init():
        sum_ref[...] = jnp.zeros_like(sum_ref)
        sq_ref[...] = jnp.zeros_like(sq_ref)

    c_blk = sum_ref.shape[0]
    n_chunks = hw_tile // acc_w

    def chunk(j, carry):
        ps, pq = carry
        start = pl.multiple_of(j * acc_w, acc_w)
        xc = x_ref[:, pl.ds(start, acc_w)].astype(jnp.float32)   # (C_blk, acc_w)
        if need_mask:
            lane = lax.broadcasted_iota(jnp.int32, (1, acc_w), 1)
            pos = t * hw_tile + start + lane
            xc = jnp.where(pos < hw, xc, 0.0)
        return ps + xc, pq + xc * xc

    zeros = jnp.zeros((c_blk, acc_w), jnp.float32)
    ps, pq = lax.fori_loop(0, n_chunks, chunk, (zeros, zeros),
                           unroll=min(n_chunks, 8))
    sum_ref[...] += ps
    sq_ref[...] += pq


# ---------------------------------------------------------------------------
# Two-pass path, pass 2: out = sigmoid(x*scale + shift) * x  (elementwise).
# ---------------------------------------------------------------------------
def _apply_kernel(x_ref, scale_ref, shift_ref, o_ref):
    # TODO(synk): a bf16 compute path (scale/shift kept f32) would cut vreg
    # pressure on v6e/v7x; f32 kept here for accuracy and v5e compatibility.
    x = x_ref[...].astype(jnp.float32)                           # (C, hw_tile)
    o_ref[...] = (jax.nn.sigmoid(x * scale_ref[...] + shift_ref[...]) * x
                  ).astype(o_ref.dtype)


def _pick_hw_tile(hw, c, target_bytes):
    """Lane tile: a multiple of 128 (or the full extent when hw < 128), sized
    so one (C, tile) f32 working block is ~target_bytes."""
    if hw < 128:
        return hw
    per_lane = max(c, 8) * 4                     # f32 working bytes per lane
    tile = max(128, (target_bytes // per_lane) // 128 * 128)
    return int(min(tile, (hw // 128) * 128))


def channel_att(x_nchw, gamma, beta, *, fused=None):
    """NAM channel attention forward. x_nchw: (N,C,H,W); gamma, beta: (C,)."""
    N, C, H, W = x_nchw.shape
    HW = H * W
    count = N * HW
    itemsize = jnp.dtype(x_nchw.dtype).itemsize

    x3 = x_nchw.reshape(N, C, HW)                # free view, no transpose

    # O(C) parameter math in plain XLA: NAM weight folded into gamma/beta.
    g = gamma.astype(jnp.float32)
    b = beta.astype(jnp.float32)
    w_nam = jnp.abs(g) / jnp.sum(jnp.abs(g))
    gw = (g * w_nam).reshape(C, 1)
    bw = (b * w_nam).reshape(C, 1)

    vmem_cap = _vmem_capacity_bytes()
    c_pad = -(-C // 8) * 8
    hw_pad = max(-(-HW // 128) * 128, 128)
    # in + out (native dtype) + ~3 f32-sized in-kernel temporaries (padded).
    fused_resident = N * c_pad * hw_pad * (2 * itemsize + 12)
    if fused is None:
        fused = fused_resident + (2 << 20) <= vmem_cap // 2

    if fused:
        out3 = pl.pallas_call(
            functools.partial(_fused_kernel, inv_count=1.0 / float(count)),
            out_shape=jax.ShapeDtypeStruct((N, C, HW), x_nchw.dtype),
            compiler_params=pltpu.CompilerParams(
                vmem_limit_bytes=int(min(max(fused_resident + (4 << 20),
                                             16 << 20), vmem_cap))),
        )(x3, gw, bw)
        return out3.reshape(N, C, H, W)

    # ---- Two-pass tiled pipeline ----
    target_bytes = (4 << 20) if vmem_cap >= (96 << 20) else (2 << 20)
    hw_tile = _pick_hw_tile(HW, C, target_bytes)
    n_t = int(pl.cdiv(HW, hw_tile))
    need_mask = (HW % hw_tile) != 0
    acc_w = 128 if hw_tile % 128 == 0 else hw_tile
    n_c = 2 if (C % 16 == 0 and C >= 16) else 1   # megacore-parallel stats (v7x)
    c_blk = C // n_c

    blk_lanes = max(-(-hw_tile // 128) * 128, 128)
    blk_native = c_pad * blk_lanes * itemsize
    blk_f32 = c_pad * blk_lanes * 4
    stats_limit = int(min(max(2 * blk_native + 3 * blk_f32 + (6 << 20),
                              16 << 20), vmem_cap))
    apply_limit = int(min(max(4 * blk_native + 3 * blk_f32 + (6 << 20),
                              16 << 20), vmem_cap))

    # Pass 1: per-channel raw sums / sums-of-squares, lane-partial (C, acc_w).
    sums, sqs = pl.pallas_call(
        functools.partial(_stats_kernel, hw=HW, hw_tile=hw_tile,
                          acc_w=acc_w, need_mask=need_mask),
        out_shape=(jax.ShapeDtypeStruct((C, acc_w), jnp.float32),
                   jax.ShapeDtypeStruct((C, acc_w), jnp.float32)),
        grid_spec=pltpu.PrefetchScalarGridSpec(
            num_scalar_prefetch=0,
            grid=(n_c, N, n_t),
            in_specs=[pl.BlockSpec((None, c_blk, hw_tile),
                                   lambda c, n, t: (n, c, t))],
            out_specs=(pl.BlockSpec((c_blk, acc_w), lambda c, n, t: (c, 0)),
                       pl.BlockSpec((c_blk, acc_w), lambda c, n, t: (c, 0))),
        ),
        compiler_params=pltpu.CompilerParams(
            dimension_semantics=("parallel", "arbitrary", "arbitrary"),
            vmem_limit_bytes=stats_limit),
    )(x3)

    # Finalize (O(C) math) in plain XLA: mean/var -> fused per-channel affine.
    sum_c = jnp.sum(sums, axis=1, keepdims=True)
    sq_c = jnp.sum(sqs, axis=1, keepdims=True)
    mean = sum_c / count
    var = jnp.maximum(sq_c / count - mean * mean, 0.0)
    inv_std = lax.rsqrt(var + BN_EPS)
    scale = inv_std * gw
    shift = bw - mean * scale

    # Pass 2: elementwise apply, fully parallel (megacore-shardable).
    # TODO(synk): sweep pipeline_mode=pl.Buffered(3) on the x spec if profiling
    # shows exposed DMA at steady state.
    out3 = pl.pallas_call(
        _apply_kernel,
        out_shape=jax.ShapeDtypeStruct((N, C, HW), x_nchw.dtype),
        grid_spec=pltpu.PrefetchScalarGridSpec(
            num_scalar_prefetch=0,
            grid=(N, n_t),
            in_specs=[
                pl.BlockSpec((None, C, hw_tile), lambda n, t: (n, 0, t)),
                pl.BlockSpec((C, 1), lambda n, t: (0, 0)),
                pl.BlockSpec((C, 1), lambda n, t: (0, 0)),
            ],
            out_specs=pl.BlockSpec((None, C, hw_tile), lambda n, t: (n, 0, t)),
        ),
        compiler_params=pltpu.CompilerParams(
            dimension_semantics=("parallel", "parallel"),
            vmem_limit_bytes=apply_limit),
    )(x3, scale, shift)

    return out3.reshape(N, C, H, W)


def channel_att_ref(x, gamma, beta):
    """Pure-JAX reference mirroring the PyTorch forward."""
    xf = x.astype(jnp.float32)
    mean = jnp.mean(xf, axis=(0, 2, 3), keepdims=True)
    var = jnp.mean((xf - mean) ** 2, axis=(0, 2, 3), keepdims=True)  # biased
    g = gamma.reshape(1, -1, 1, 1)
    b = beta.reshape(1, -1, 1, 1)
    x_bn = (xf - mean) / jnp.sqrt(var + BN_EPS) * g + b
    w = jnp.abs(g) / jnp.sum(jnp.abs(gamma))
    return (jax.nn.sigmoid(x_bn * w) * xf).astype(x.dtype)


if __name__ == "__main__":
    key = jax.random.PRNGKey(0)
    k1, k2, k3, k4 = jax.random.split(key, 4)

    # Small shape -> fused single-pass path (auto-selected).
    N, C, H, W = 2, 4, 16, 16
    x = jax.random.normal(k1, (N, C, H, W), dtype=jnp.float32)
    gamma = 1.0 + 0.1 * jax.random.normal(k2, (C,), dtype=jnp.float32)
    beta = 0.1 * jax.random.normal(k3, (C,), dtype=jnp.float32)

    out_fused = jax.block_until_ready(channel_att(x, gamma, beta))
    ref = channel_att_ref(x, gamma, beta)
    assert out_fused.shape == (N, C, H, W)
    assert jnp.allclose(out_fused, ref, atol=1e-5, rtol=1e-5)

    # Same input, forced through the tiled two-pass pipeline.
    out_tiled = jax.block_until_ready(channel_att(x, gamma, beta, fused=False))
    assert jnp.allclose(out_tiled, ref, atol=1e-5, rtol=1e-5)

    # Non-multiple-of-128 spatial size (HW = 196) + channel-blocked stats pass.
    N2, C2, H2, W2 = 2, 32, 14, 14
    x2 = jax.random.normal(k4, (N2, C2, H2, W2), dtype=jnp.float32)
    gamma2 = 1.0 + 0.05 * jnp.arange(C2, dtype=jnp.float32)
    beta2 = 0.01 * jnp.arange(C2, dtype=jnp.float32)
    out2 = jax.block_until_ready(channel_att(x2, gamma2, beta2, fused=False))
    ref2 = channel_att_ref(x2, gamma2, beta2)
    assert jnp.allclose(out2, ref2, atol=1e-5, rtol=1e-5)

    print("KERNEL_OK")
</pallas_src>

<mosaic_0001>
module attributes {stable_mosaic.version = 11 : i64} {
  func.func @_fused_kernel(%arg0: memref<2x4x256xf32, #tpu.memory_space<vmem>>, %arg1: memref<4x1xf32, #tpu.memory_space<vmem>>, %arg2: memref<4x1xf32, #tpu.memory_space<vmem>>, %arg3: memref<2x4x256xf32, #tpu.memory_space<vmem>>) attributes {dimension_semantics = [], scalar_prefetch = 0 : i64, scratch_operands = 0 : i64, tpu.core_type = #tpu.core_type<tc>} {
    %cst = arith.constant 0.000000e+00 : f32
    %0 = vector.broadcast %cst : f32 to vector<4x1xf32>
    %c0_i32 = arith.constant 0 : i32
    %c2_i32 = arith.constant 2 : i32
    %1 = arith.addi %c0_i32, %c2_i32 : i32
    %c1_i32 = arith.constant 1 : i32
    %2:2 = scf.for %arg4 = %c0_i32 to %1 step %c1_i32 iter_args(%arg5 = %0, %arg6 = %0) -> (vector<4x1xf32>, vector<4x1xf32>)  : i32 {
      %20 = arith.index_cast %arg4 : i32 to index
      %c0_12 = arith.constant 0 : index
      %c0_13 = arith.constant 0 : index
      %21 = vector.load %arg0[%20, %c0_12, %c0_13] : memref<2x4x256xf32, #tpu.memory_space<vmem>>, vector<1x4x256xf32>
      %22 = vector.shape_cast %21 : vector<1x4x256xf32> to vector<4x256xf32>
      %cst_14 = arith.constant dense<0.000000e+00> : vector<4xf32>
      %23 = vector.multi_reduction <add>, %22, %cst_14 [1] : vector<4x256xf32> to vector<4xf32>
      %24 = vector.shape_cast %23 : vector<4xf32> to vector<4x1xf32>
      %25 = arith.addf %arg5, %24 : vector<4x1xf32>
      %26 = arith.mulf %22, %22 : vector<4x256xf32>
      %cst_15 = arith.constant dense<0.000000e+00> : vector<4xf32>
      %27 = vector.multi_reduction <add>, %26, %cst_15 [1] : vector<4x256xf32> to vector<4xf32>
      %28 = vector.shape_cast %27 : vector<4xf32> to vector<4x1xf32>
      %29 = arith.addf %arg6, %28 : vector<4x1xf32>
      scf.yield %25, %29 : vector<4x1xf32>, vector<4x1xf32>
    }
    %c2_i32_0 = arith.constant 2 : i32
    %cst_1 = arith.constant 0.001953125 : f32
    %3 = vector.broadcast %cst_1 : f32 to vector<4x1xf32>
    %4 = arith.mulf %2#0, %3 : vector<4x1xf32>
    %cst_2 = arith.constant 0.001953125 : f32
    %5 = vector.broadcast %cst_2 : f32 to vector<4x1xf32>
    %6 = arith.mulf %2#1, %5 : vector<4x1xf32>
    %7 = arith.mulf %4, %4 : vector<4x1xf32>
    %8 = arith.subf %6, %7 : vector<4x1xf32>
    %cst_3 = arith.constant 0.000000e+00 : f32
    %9 = vector.broadcast %cst_3 : f32 to vector<4x1xf32>
    %10 = arith.maximumf %8, %9 : vector<4x1xf32>
    %cst_4 = arith.constant 9.99999974E-6 : f32
    %11 = vector.broadcast %cst_4 : f32 to vector<4x1xf32>
    %12 = arith.addf %10, %11 : vector<4x1xf32>
    %13 = math.rsqrt %12 : vector<4x1xf32>
    %c0 = arith.constant 0 : index
    %c0_5 = arith.constant 0 : index
    %14 = vector.load %arg1[%c0, %c0_5] : memref<4x1xf32, #tpu.memory_space<vmem>>, vector<4x1xf32>
    %15 = arith.mulf %13, %14 : vector<4x1xf32>
    %c0_6 = arith.constant 0 : index
    %c0_7 = arith.constant 0 : index
    %16 = vector.load %arg2[%c0_6, %c0_7] : memref<4x1xf32, #tpu.memory_space<vmem>>, vector<4x1xf32>
    %17 = arith.mulf %4, %15 : vector<4x1xf32>
    %18 = arith.subf %16, %17 : vector<4x1xf32>
    %c0_i32_8 = arith.constant 0 : i32
    %c2_i32_9 = arith.constant 2 : i32
    %19 = arith.addi %c0_i32_8, %c2_i32_9 : i32
    %c1_i32_10 = arith.constant 1 : i32
    scf.for %arg4 = %c0_i32_8 to %19 step %c1_i32_10  : i32 {
      %20 = arith.index_cast %arg4 : i32 to index
      %c0_12 = arith.constant 0 : index
      %c0_13 = arith.constant 0 : index
      %21 = vector.load %arg0[%20, %c0_12, %c0_13] : memref<2x4x256xf32, #tpu.memory_space<vmem>>, vector<1x4x256xf32>
      %22 = vector.shape_cast %21 : vector<1x4x256xf32> to vector<4x256xf32>
      %23 = vector.broadcast %15 : vector<4x1xf32> to vector<4x256xf32>
      %24 = arith.mulf %22, %23 : vector<4x256xf32>
      %25 = vector.broadcast %18 : vector<4x1xf32> to vector<4x256xf32>
      %26 = arith.addf %24, %25 : vector<4x256xf32>
      %27 = arith.negf %26 : vector<4x256xf32>
      %28 = math.exp %27 : vector<4x256xf32>
      %cst_14 = arith.constant 1.000000e+00 : f32
      %29 = vector.broadcast %cst_14 : f32 to vector<4x256xf32>
      %30 = arith.addf %29, %28 : vector<4x256xf32>
      %31 = arith.divf %29, %30 : vector<4x256xf32>
      %32 = arith.mulf %31, %22 : vector<4x256xf32>
      %33 = arith.index_cast %arg4 : i32 to index
      %c0_15 = arith.constant 0 : index
      %c0_16 = arith.constant 0 : index
      %34 = vector.load %arg3[%33, %c0_15, %c0_16] : memref<2x4x256xf32, #tpu.memory_space<vmem>>, vector<1x4x256xf32>
      %35 = vector.shape_cast %34 : vector<1x4x256xf32> to vector<4x256xf32>
      %36 = vector.shape_cast %32 : vector<4x256xf32> to vector<1x4x256xf32>
      tpu.vector_store %arg3[%33, %c0_15, %c0_16], %36 {strides = array<i32>} : memref<2x4x256xf32, #tpu.memory_space<vmem>>, vector<1x4x256xf32>,
    }
    %c2_i32_11 = arith.constant 2 : i32
    return
  }
}

</mosaic_0001>

<llo_original>
// kernel: tpu_custom_call.1
$region0: #{tpu_custom_call.1}
  #allocation0 [shape = 'u32[]', space=smem, size = 0x4, offset = 0x4, fixed_abs, tag = 'smem constant byte address 0x4 - core index']
  #allocation1 [shape = 'u32[144,128]{1,0:T(1,128)}', space=vmem, size = 0x12000, scoped, tag = 'internal scratch']
  %s0 = inlined_call_operand.hbm [shape: f32[2,4,256], index: 0, kind: input, shape index: {}]
  %s1 = inlined_call_operand.vmem [shape: f32[4,1], index: 1, kind: input, shape index: {}]
  %s2 = inlined_call_operand.vmem [shape: f32[4,1], index: 2, kind: input, shape index: {}]
  %s3 = inlined_call_operand.hbm [shape: f32[2,4,256], index: 3, kind: output, shape index: {}]
  %s4 = sld [smem:[#allocation0]]
  $region40: #{tpu_custom_call.1} parent=0
    _
  %s6 = ssub.s32 1, %s4
  %s7 = scalar_select 0, %s6, %s4
  $region1: #{tpu_custom_call.1} parent=0
    #allocation2 [shape = 'u8[8192]{0}', space=vmem, size = 0x2000, scoped, tag = 'input window, operand 0, single buffered']
    #allocation3 [shape = 's32[1]{0}', space=sflag, size = 0x4, scoped, tag = 'scoped memory for tpu_custom_call.1']
    #allocation4 [shape = 's32[1]{0}', space=sflag, size = 0x4, scoped, tag = 'scoped memory for tpu_custom_call.1']
    #allocation5 [shape = 'u8[8192]{0}', space=vmem, size = 0x2000, scoped, tag = 'output window, operand 0, single buffered']
    %8 = vsyncpa [#allocation3], 0
    %9 = vsyncpa [#allocation4], 0
    // Predicated region
    $region2: #{tpu_custom_call.1} parent=1 // pred_check
      _
    $region3: #{tpu_custom_call.1} parent=1 // pred_check_branch
      %11 = sbr.rel (0) target = $region5
    $region4: #{tpu_custom_call.1} parent=1 // pred_region
      %s13 = ssub.s32 256, 256
      %14 = vsyncadd [#allocation3], %s13
      %s15 = sshll.u32 [#allocation2], 4
      %s16 = int_to_ptr.vmem [resolvable:$true] %s15
      %21 = dma.hbm_to_vmem [thread:$0]  %s0, 256, %s16, [#allocation3], 128, 128, 8
    $region5: #{tpu_custom_call.1} parent=1 // pred_fallthru
      _
    // Predicated region
    $region6: #{tpu_custom_call.1} parent=1 // pred_check
      _
    $region7: #{tpu_custom_call.1} parent=1 // pred_check_branch
      %23 = sbr.rel (0) target = $region9
    $region8: #{tpu_custom_call.1} parent=1 // pred_region
      _
    $region9: #{tpu_custom_call.1} parent=1 // pred_fallthru
      _
    // Predicated region
    $region10: #{tpu_custom_call.1} parent=1 // pred_check
      _
    $region11: #{tpu_custom_call.1} parent=1 // pred_check_branch
      %25 = sbr.rel (0) target = $region13
    $region12: #{tpu_custom_call.1} parent=1 // pred_region
      _
    $region13: #{tpu_custom_call.1} parent=1 // pred_fallthru
      _
    // Predicated region
    $region14: #{tpu_custom_call.1} parent=1 // pred_check
      _
    $region15: #{tpu_custom_call.1} parent=1 // pred_check_branch
      %27 = sbr.rel (0) target = $region17
    $region16: #{tpu_custom_call.1} parent=1 // pred_region
      %28 = dma.done [#allocation3], 256
    $region17: #{tpu_custom_call.1} parent=1 // pred_fallthru
      _
    loop: start=0, step=1, limit=2
    $region18: #{tpu_custom_call.1} parent=1 // loop_pre_header
      _
    $region19: #{tpu_custom_call.1} parent=1 // loop_header
      %s30 = sphi 0, %s34
      %p31 = scmp.ge.s32.totalorder %s30, 2
      %v35 = vphi 0.0, %v50
      %v36 = vphi 0.0, %v60
    $region20: #{tpu_custom_call.1} parent=1 // loop_header_branch
      %33 = sbr.rel (%p31) target = $region24
    $region21: #{tpu_custom_call.1} parent=1 // loop_body
      %s37 = smul.u32 %s30, 2
      %s38 = smul.addr %s37, 4
      %s39 = scalar_lea.vmem [#allocation2], %s38
      %v40 = vld [vmem:[%s39] sm:$0xff]
      %v42 = vcombine.high %v40, %v40
      %vm44 = vcmask 1043456
      %v45 = vsel %vm44, %v40, 0.0
      %v46 = vsel %vm44, %v42, 0.0
      %v47 = vadd.f32 %v45, %v46
      %48 = vadd.xlane.f32.xlu0 %v47
      %v49 = vpop.xlane.xlu0 %48
      %v50 = vadd.f32 %v35, %v49
      %v51 = vmul.f32 %v40, %v40
      %v53 = vcombine.high %v51, %v51
      %v55 = vsel %vm44, %v51, 0.0
      %v56 = vsel %vm44, %v53, 0.0
      %v57 = vadd.f32 %v55, %v56
      %58 = vadd.xlane.f32.xlu0 %v57
      %v59 = vpop.xlane.xlu0 %58
      %v60 = vadd.f32 %v36, %v59
    $region22: #{tpu_custom_call.1} parent=1 // loop_footer
      %s34 = sadd.s32 1, %s30
    $region23: #{tpu_custom_call.1} parent=1 // loop_footer_branch
      %29 = sbr.rel target = $region19
    $region24: #{tpu_custom_call.1} parent=1 // loop_exit
      _
    %v61 = vmul.f32 %v35, 0.001953125
    %v62 = vmul.f32 %v36, 0.001953125
    %v63 = vmul.f32 %v61, %v61
    %v64 = vsub.f32 %v62, %v63
    %v65 = vmax.f32 %v64, 0.0
    %v66 = vadd.f32 %v65, 1e-05
    %v67 = vrsqrt.pop %v66
    %v68 = vld [vmem:[%s1] sm:$0xf]
    %v69 = vmul.f32 %v67, %v68
    %v70 = vld [vmem:[%s2] sm:$0xf]
    %v71 = vmul.f32 %v61, %v69
    %v72 = vsub.f32 %v70, %v71
    loop: start=0, step=1, limit=2
    $region25: #{tpu_custom_call.1} parent=1 // loop_pre_header
      _
    $region26: #{tpu_custom_call.1} parent=1 // loop_header
      %s74 = sphi 0, %s78
      %p75 = scmp.ge.s32.totalorder %s74, 2
    $region27: #{tpu_custom_call.1} parent=1 // loop_header_branch
      %77 = sbr.rel (%p75) target = $region31
    $region28: #{tpu_custom_call.1} parent=1 // loop_body
      %s79 = smul.u32 %s74, 2
      %s80 = smul.addr %s79, 4
      %s81 = scalar_lea.vmem [#allocation2], %s80
      %v82 = vld [vmem:[%s81] sm:$0xff]
      %84 = vset.pattern.permute.xlu0 0
      %85 = vperm.xlu0 %84, %v69
      %v86 = vpop.permute.xlu0 %85
      %v88 = vunpack.c.l.s4 839922192
      %v89 = vunpack.c.0.s8 %v88
      %v90 = vlaneseq
      %v91 = vshrl.u32 %v90, 7
      %v92 = vsub.s32 %v89, %v91
      %v93 = vrot.slane %v86, %v92
      %v95 = vmul.f32 %v82, %v93
      %97 = vset.pattern.permute.xlu0 0
      %98 = vperm.xlu0 %97, %v72
      %v99 = vpop.permute.xlu0 %98
      %v101 = vunpack.c.l.s4 839922192
      %v102 = vunpack.c.0.s8 %v101
      %v103 = vlaneseq
      %v104 = vshrl.u32 %v103, 7
      %v105 = vsub.s32 %v102, %v104
      %v106 = vrot.slane %v99, %v105
      %v108 = vadd.f32 %v95, %v106
      %v109 = vxor.u32 %v108, 2147483648
      %v110 = vmul.f32 %v109, 1.442695
      %v111 = vpow.pop %v110
      %v112 = vadd.f32 %v111, 1.0
      %v113 = vrcp.pop %v112
      %v114 = vmul.f32 1.0, %v113
      %v115 = vmul.f32 %v114, %v82
      %s116 = smul.addr %s79, 4
      %s117 = scalar_lea.vmem [#allocation5], %s116
      %118 = vst [vmem:[%s117] sm:$0xff] %v115
    $region29: #{tpu_custom_call.1} parent=1 // loop_footer
      %s78 = sadd.s32 1, %s74
    $region30: #{tpu_custom_call.1} parent=1 // loop_footer_branch
      %73 = sbr.rel target = $region26
    $region31: #{tpu_custom_call.1} parent=1 // loop_exit
      _
    // Predicated region
    $region32: #{tpu_custom_call.1} parent=1 // pred_check
      _
    $region33: #{tpu_custom_call.1} parent=1 // pred_check_branch
      %120 = sbr.rel (0) target = $region35
    $region34: #{tpu_custom_call.1} parent=1 // pred_region
      %s122 = ssub.s32 256, 256
      %123 = vsyncadd [#allocation4], %s122
      %s124 = sshll.u32 [#allocation5], 4
      %s125 = int_to_ptr.vmem [resolvable:$true] %s124
      %130 = dma.vmem_to_hbm [thread:$0]  %s125, 256, %s3, [#allocation4], 128, 128, 8
    $region35: #{tpu_custom_call.1} parent=1 // pred_fallthru
      _
    // Predicated region
    $region36: #{tpu_custom_call.1} parent=1 // pred_check
      _
    $region37: #{tpu_custom_call.1} parent=1 // pred_check_branch
      %132 = sbr.rel (0) target = $region39
    $region38: #{tpu_custom_call.1} parent=1 // pred_region
      %133 = dma.done [#allocation4], 256
    $region39: #{tpu_custom_call.1} parent=1 // pred_fallthru
      _
    %134 = vsyncpa [#allocation3], 1
    %135 = vsyncpa [#allocation4], 1

</llo_original>
